<compile_context>
chip_gen: v5e
topology: v5e:2x2
jax: 0.10.0
libtpu: 0.0.40
codegen_flags: <defaults>
</compile_context>

<pallas_src>
import functools

import jax
import jax.numpy as jnp
from jax.experimental import pallas as pl
from jax.experimental.pallas import tpu as pltpu

HIDDEN = 256
IN_LANES = 128    # zero-padded width of packed state||action (lane-dense load)
OUT_LANES = 128   # zero-padded output width (lane-dense store)


# --------------------------------------------------------------------------
# Kernel
# --------------------------------------------------------------------------
def dynamics_kernel(sa_ref, w1_ref, b1_ref, w2_ref, b2_ref, w3_ref, b3_ref,
                    w4_ref, b4_ref, w5_ref, b5_ref, out_ref, *,
                    bf16_elementwise):
    """Fused 5-layer MLP on one (tile_m, 128) batch tile.

    All dots are bf16 x bf16 on the MXU with f32 accumulation; the bias add
    happens in f32, then (on v6e/v7x) h is downcast to bf16 before the ReLU
    and carried in bf16 between layers.
    """
    act_dtype = jnp.bfloat16 if bf16_elementwise else jnp.float32

    h = sa_ref[...]  # (tile_m, 128) zero-padded state||action, f32
    for w_ref, b_ref in ((w1_ref, b1_ref), (w2_ref, b2_ref),
                         (w3_ref, b3_ref), (w4_ref, b4_ref)):
        z = jnp.dot(h.astype(jnp.bfloat16), w_ref[...],
                    preferred_element_type=jnp.float32) + b_ref[...]
        h = jnp.maximum(z.astype(act_dtype), 0.0)

    # Output layer (no activation); W5/b5 are zero-padded to 128 lanes so the
    # store is a full-lane, unmasked vst.
    z = jnp.dot(h.astype(jnp.bfloat16), w5_ref[...],
                preferred_element_type=jnp.float32) + b5_ref[...]
    out_ref[...] = z.astype(out_ref.dtype)


# --------------------------------------------------------------------------
# Parameters
# --------------------------------------------------------------------------
def make_dynamics_params(key, state_dim, action_dim, hidden=HIDDEN):
    """f32 params with PyTorch nn.Linear default init; weights stored (in, out)."""
    keys = jax.random.split(key, 5)
    dims = [(state_dim + action_dim, hidden),
            (hidden, hidden), (hidden, hidden), (hidden, hidden),
            (hidden, state_dim)]
    params = []
    for k, (fi, fo) in zip(keys, dims):
        kw, kb = jax.random.split(k)
        bound = 1.0 / float(fi) ** 0.5
        w = jax.random.uniform(kw, (fi, fo), jnp.float32, -bound, bound)
        b = jax.random.uniform(kb, (1, fo), jnp.float32, -bound, bound)
        params.extend((w, b))
    return tuple(params)  # (w1, b1, ..., w5, b5), all f32


def pack_params_for_kernel(params, state_dim):
    """Zero-pad W1 rows to 128 and W5/b5 cols to 128; weights -> bf16."""
    w1, b1, w2, b2, w3, b3, w4, b4, w5, b5 = params
    in_dim = w1.shape[0]
    assert in_dim <= IN_LANES and state_dim <= OUT_LANES, (
        "this packing assumes state_dim+action_dim <= 128 and state_dim <= 128")

    w1p = jnp.zeros((IN_LANES, HIDDEN), jnp.float32).at[:in_dim, :].set(w1)
    w5p = jnp.zeros((HIDDEN, OUT_LANES), jnp.float32).at[:, :state_dim].set(w5)
    b5p = jnp.zeros((1, OUT_LANES), jnp.float32).at[:, :state_dim].set(b5)

    bf16 = lambda w: w.astype(jnp.bfloat16)
    return (bf16(w1p), b1, bf16(w2), b2, bf16(w3), b3, bf16(w4), b4,
            bf16(w5p), b5p)


# --------------------------------------------------------------------------
# Wrapper
# --------------------------------------------------------------------------
def _round_up(x, m):
    return (x + m - 1) // m * m


def _device_kind():
    try:
        return jax.devices()[0].device_kind.lower()
    except Exception:
        return ""


def _choose_tile(rows, tm, min_steps):
    """Largest 8-aligned tile <= tm giving at least `min_steps` grid steps."""
    tile = min(tm, _round_up(rows, 8))
    if min_steps > 1:
        tile = min(tile, max(8, _round_up(-(-rows // min_steps), 8)))
    padded = _round_up(rows, tile)
    return tile, padded


def dynamics_forward(state, action, params, *, tm=None):
    """Equivalent of Dynamics.forward(state, action) as one fused kernel.

    tm: max rows per grid step.  Default: 128 on v5e (vreg/vst pressure),
    512 elsewhere (overhead-dominated kernel -> fewer grid steps).
    """
    batch, state_dim = state.shape
    action_dim = action.shape[1]
    in_dim = state_dim + action_dim

    kind = _device_kind()
    is_v5e = ("v5 lite" in kind) or ("v5e" in kind) or ("v5litepod" in kind)
    is_v7x = ("v7" in kind) or ("7x" in kind)
    if tm is None:
        tm = 128 if is_v5e else 512
    bf16_elementwise = not is_v5e  # v5e has no bf16 VALU

    (w1p, b1, w2, b2, w3, b3, w4, b4, w5p, b5p) = pack_params_for_kernel(
        params, state_dim)

    # Batch tiling: pad rows to an 8-aligned multiple of the tile.  On v7x,
    # split large batches into >=2 tiles so dimension_semantics=("parallel",)
    # actually shards work across both TensorCores.
    rows = _round_up(batch, 8)
    min_steps = 2 if (is_v7x and rows >= 64) else 1
    tile_m, padded = _choose_tile(rows, tm, min_steps)

    # Lane-dense packed input: state||action zero-padded to 128 lanes.
    sa = jnp.concatenate([state, action], axis=1)
    sa = jnp.pad(sa, ((0, padded - batch), (0, IN_LANES - in_dim)))

    grid = (padded // tile_m,)

    def row_spec(cols):
        return pl.BlockSpec((tile_m, cols), lambda i: (i, 0))

    def const_spec(arr):
        # Same block for every grid step -> DMA'd once, VMEM-resident across
        # the whole grid.
        return pl.BlockSpec(arr.shape, lambda i: (0, 0))

    kernel = functools.partial(dynamics_kernel,
                               bf16_elementwise=bf16_elementwise)

    out = pl.pallas_call(
        kernel,
        out_shape=jax.ShapeDtypeStruct((padded, OUT_LANES), jnp.float32),
        grid=grid,
        in_specs=[
            row_spec(IN_LANES),                      # packed state||action tile
            const_spec(w1p), const_spec(b1),
            const_spec(w2), const_spec(b2),
            const_spec(w3), const_spec(b3),
            const_spec(w4), const_spec(b4),
            const_spec(w5p), const_spec(b5p),
        ],
        out_specs=row_spec(OUT_LANES),
        compiler_params=pltpu.CompilerParams(
            dimension_semantics=("parallel",),   # megacore shard on v7x
            vmem_limit_bytes=32 * 1024 * 1024,
        ),
    )(sa, w1p, b1, w2, b2, w3, b3, w4, b4, w5p, b5p)

    return out[:batch, :state_dim]


# --------------------------------------------------------------------------
# Pure-f32 reference (matches the PyTorch Dynamics module's math)
# --------------------------------------------------------------------------
def dynamics_reference(state, action, params):
    w1, b1, w2, b2, w3, b3, w4, b4, w5, b5 = params
    h = jnp.concatenate([state, action], axis=1)
    hp = jax.lax.Precision.HIGHEST
    for w, b in ((w1, b1), (w2, b2), (w3, b3), (w4, b4)):
        h = jnp.maximum(jnp.dot(h, w, precision=hp) + b, 0.0)
    return jnp.dot(h, w5, precision=hp) + b5


if __name__ == "__main__":
    key = jax.random.PRNGKey(0)
    k_state, k_action, k_params = jax.random.split(key, 3)

    state_dim, action_dim = 16, 8
    params = make_dynamics_params(k_params, state_dim, action_dim)

    # Small batch (single grid step).
    batch = 8
    state = jax.random.normal(k_state, (batch, state_dim), jnp.float32)
    action = jax.random.normal(k_action, (batch, action_dim), jnp.float32)

    out = jax.block_until_ready(dynamics_forward(state, action, params))
    ref = dynamics_reference(state, action, params)
    assert out.shape == (batch, state_dim)
    # Loose tolerance: kernel uses bf16 weights / bf16 MXU inputs vs the f32
    # reference of the original PyTorch module.
    assert jnp.allclose(out, ref, atol=3e-2, rtol=3e-2), (
        "max abs err %.4g" % float(jnp.max(jnp.abs(out - ref))))

    # Larger, non-multiple batch; force a small tile to exercise the padded,
    # multi-step grid path on any chip.
    batch2 = 300
    ks2, ka2 = jax.random.split(jax.random.PRNGKey(1))
    state2 = jax.random.normal(ks2, (batch2, state_dim), jnp.float32)
    action2 = jax.random.normal(ka2, (batch2, action_dim), jnp.float32)

    out2 = jax.block_until_ready(
        dynamics_forward(state2, action2, params, tm=128))
    ref2 = dynamics_reference(state2, action2, params)
    assert out2.shape == (batch2, state_dim)
    assert jnp.allclose(out2, ref2, atol=3e-2, rtol=3e-2), (
        "max abs err %.4g" % float(jnp.max(jnp.abs(out2 - ref2))))

    print("KERNEL_OK")
</pallas_src>

<mosaic_0001>
module attributes {stable_mosaic.version = 11 : i64} {
  func.func @dynamics_kernel(%arg0: i32, %arg1: memref<8x128xf32, #tpu.memory_space<vmem>>, %arg2: memref<128x256xbf16, #tpu.memory_space<vmem>>, %arg3: memref<1x256xf32, #tpu.memory_space<vmem>>, %arg4: memref<256x256xbf16, #tpu.memory_space<vmem>>, %arg5: memref<1x256xf32, #tpu.memory_space<vmem>>, %arg6: memref<256x256xbf16, #tpu.memory_space<vmem>>, %arg7: memref<1x256xf32, #tpu.memory_space<vmem>>, %arg8: memref<256x256xbf16, #tpu.memory_space<vmem>>, %arg9: memref<1x256xf32, #tpu.memory_space<vmem>>, %arg10: memref<256x128xbf16, #tpu.memory_space<vmem>>, %arg11: memref<1x128xf32, #tpu.memory_space<vmem>>, %arg12: memref<8x128xf32, #tpu.memory_space<vmem>>) attributes {dimension_semantics = [#tpu.dimension_semantics<parallel>], iteration_bounds = array<i64: 1>, scalar_prefetch = 0 : i64, scratch_operands = 0 : i64, tpu.core_type = #tpu.core_type<tc>, window_params = [{transform_indices = @transform_0, window_bounds = array<i64: 8, 128>}, {pipeline_mode = #tpu.pipeline_mode<synchronous>, transform_indices = @transform_1, window_bounds = array<i64: 128, 256>}, {pipeline_mode = #tpu.pipeline_mode<synchronous>, transform_indices = @transform_2, window_bounds = array<i64: 1, 256>}, {pipeline_mode = #tpu.pipeline_mode<synchronous>, transform_indices = @transform_3, window_bounds = array<i64: 256, 256>}, {pipeline_mode = #tpu.pipeline_mode<synchronous>, transform_indices = @transform_4, window_bounds = array<i64: 1, 256>}, {pipeline_mode = #tpu.pipeline_mode<synchronous>, transform_indices = @transform_5, window_bounds = array<i64: 256, 256>}, {pipeline_mode = #tpu.pipeline_mode<synchronous>, transform_indices = @transform_6, window_bounds = array<i64: 1, 256>}, {pipeline_mode = #tpu.pipeline_mode<synchronous>, transform_indices = @transform_7, window_bounds = array<i64: 256, 256>}, {pipeline_mode = #tpu.pipeline_mode<synchronous>, transform_indices = @transform_8, window_bounds = array<i64: 1, 256>}, {pipeline_mode = #tpu.pipeline_mode<synchronous>, transform_indices = @transform_9, window_bounds = array<i64: 256, 128>}, {pipeline_mode = #tpu.pipeline_mode<synchronous>, transform_indices = @transform_10, window_bounds = array<i64: 1, 128>}, {transform_indices = @transform_11, window_bounds = array<i64: 8, 128>}]} {
    %c0 = arith.constant 0 : index
    %c0_0 = arith.constant 0 : index
    %0 = vector.load %arg1[%c0, %c0_0] : memref<8x128xf32, #tpu.memory_space<vmem>>, vector<8x128xf32>
    %1 = arith.truncf %0 : vector<8x128xf32> to vector<8x128xbf16>
    %c0_1 = arith.constant 0 : index
    %c0_2 = arith.constant 0 : index
    %2 = vector.load %arg2[%c0_1, %c0_2] : memref<128x256xbf16, #tpu.memory_space<vmem>>, vector<128x256xbf16>
    %cst = arith.constant dense<0.000000e+00> : vector<8x256xf32>
    %3 = tpu.matmul %1, %2, %cst {dimension_numbers = #tpu.dot_dimension_numbers<[1], [0], [0], [1], [0, 0, 1, 1], [], []>} : vector<8x128xbf16>, vector<128x256xbf16>, vector<8x256xf32> -> vector<8x256xf32>
    %c0_3 = arith.constant 0 : index
    %c0_4 = arith.constant 0 : index
    %4 = vector.load %arg3[%c0_3, %c0_4] : memref<1x256xf32, #tpu.memory_space<vmem>>, vector<1x256xf32>
    %5 = vector.broadcast %4 : vector<1x256xf32> to vector<8x256xf32>
    %6 = arith.addf %3, %5 : vector<8x256xf32>
    %7 = arith.truncf %6 : vector<8x256xf32> to vector<8x256xbf16>
    %cst_5 = arith.constant 0.000000e+00 : bf16
    %8 = vector.broadcast %cst_5 : bf16 to vector<8x256xbf16>
    %9 = arith.maximumf %7, %8 : vector<8x256xbf16>
    %c0_6 = arith.constant 0 : index
    %c0_7 = arith.constant 0 : index
    %10 = vector.load %arg4[%c0_6, %c0_7] : memref<256x256xbf16, #tpu.memory_space<vmem>>, vector<256x256xbf16>
    %cst_8 = arith.constant dense<0.000000e+00> : vector<8x256xf32>
    %11 = tpu.matmul %9, %10, %cst_8 {dimension_numbers = #tpu.dot_dimension_numbers<[1], [0], [0], [1], [0, 0, 1, 1], [], []>} : vector<8x256xbf16>, vector<256x256xbf16>, vector<8x256xf32> -> vector<8x256xf32>
    %c0_9 = arith.constant 0 : index
    %c0_10 = arith.constant 0 : index
    %12 = vector.load %arg5[%c0_9, %c0_10] : memref<1x256xf32, #tpu.memory_space<vmem>>, vector<1x256xf32>
    %13 = vector.broadcast %12 : vector<1x256xf32> to vector<8x256xf32>
    %14 = arith.addf %11, %13 : vector<8x256xf32>
    %15 = arith.truncf %14 : vector<8x256xf32> to vector<8x256xbf16>
    %cst_11 = arith.constant 0.000000e+00 : bf16
    %16 = vector.broadcast %cst_11 : bf16 to vector<8x256xbf16>
    %17 = arith.maximumf %15, %16 : vector<8x256xbf16>
    %c0_12 = arith.constant 0 : index
    %c0_13 = arith.constant 0 : index
    %18 = vector.load %arg6[%c0_12, %c0_13] : memref<256x256xbf16, #tpu.memory_space<vmem>>, vector<256x256xbf16>
    %cst_14 = arith.constant dense<0.000000e+00> : vector<8x256xf32>
    %19 = tpu.matmul %17, %18, %cst_14 {dimension_numbers = #tpu.dot_dimension_numbers<[1], [0], [0], [1], [0, 0, 1, 1], [], []>} : vector<8x256xbf16>, vector<256x256xbf16>, vector<8x256xf32> -> vector<8x256xf32>
    %c0_15 = arith.constant 0 : index
    %c0_16 = arith.constant 0 : index
    %20 = vector.load %arg7[%c0_15, %c0_16] : memref<1x256xf32, #tpu.memory_space<vmem>>, vector<1x256xf32>
    %21 = vector.broadcast %20 : vector<1x256xf32> to vector<8x256xf32>
    %22 = arith.addf %19, %21 : vector<8x256xf32>
    %23 = arith.truncf %22 : vector<8x256xf32> to vector<8x256xbf16>
    %cst_17 = arith.constant 0.000000e+00 : bf16
    %24 = vector.broadcast %cst_17 : bf16 to vector<8x256xbf16>
    %25 = arith.maximumf %23, %24 : vector<8x256xbf16>
    %c0_18 = arith.constant 0 : index
    %c0_19 = arith.constant 0 : index
    %26 = vector.load %arg8[%c0_18, %c0_19] : memref<256x256xbf16, #tpu.memory_space<vmem>>, vector<256x256xbf16>
    %cst_20 = arith.constant dense<0.000000e+00> : vector<8x256xf32>
    %27 = tpu.matmul %25, %26, %cst_20 {dimension_numbers = #tpu.dot_dimension_numbers<[1], [0], [0], [1], [0, 0, 1, 1], [], []>} : vector<8x256xbf16>, vector<256x256xbf16>, vector<8x256xf32> -> vector<8x256xf32>
    %c0_21 = arith.constant 0 : index
    %c0_22 = arith.constant 0 : index
    %28 = vector.load %arg9[%c0_21, %c0_22] : memref<1x256xf32, #tpu.memory_space<vmem>>, vector<1x256xf32>
    %29 = vector.broadcast %28 : vector<1x256xf32> to vector<8x256xf32>
    %30 = arith.addf %27, %29 : vector<8x256xf32>
    %31 = arith.truncf %30 : vector<8x256xf32> to vector<8x256xbf16>
    %cst_23 = arith.constant 0.000000e+00 : bf16
    %32 = vector.broadcast %cst_23 : bf16 to vector<8x256xbf16>
    %33 = arith.maximumf %31, %32 : vector<8x256xbf16>
    %c0_24 = arith.constant 0 : index
    %c0_25 = arith.constant 0 : index
    %34 = vector.load %arg10[%c0_24, %c0_25] : memref<256x128xbf16, #tpu.memory_space<vmem>>, vector<256x128xbf16>
    %cst_26 = arith.constant dense<0.000000e+00> : vector<8x128xf32>
    %35 = tpu.matmul %33, %34, %cst_26 {dimension_numbers = #tpu.dot_dimension_numbers<[1], [0], [0], [1], [0, 0, 1, 1], [], []>} : vector<8x256xbf16>, vector<256x128xbf16>, vector<8x128xf32> -> vector<8x128xf32>
    %c0_27 = arith.constant 0 : index
    %c0_28 = arith.constant 0 : index
    %36 = vector.load %arg11[%c0_27, %c0_28] : memref<1x128xf32, #tpu.memory_space<vmem>>, vector<1x128xf32>
    %37 = vector.broadcast %36 : vector<1x128xf32> to vector<8x128xf32>
    %38 = arith.addf %35, %37 : vector<8x128xf32>
    %c0_29 = arith.constant 0 : index
    %c0_30 = arith.constant 0 : index
    %39 = vector.load %arg12[%c0_29, %c0_30] : memref<8x128xf32, #tpu.memory_space<vmem>>, vector<8x128xf32>
    tpu.vector_store %arg12[%c0_29, %c0_30], %38 {strides = array<i32>} : memref<8x128xf32, #tpu.memory_space<vmem>>, vector<8x128xf32>,
    return
  }
  func.func @transform_0(%arg0: i32) -> (i32, i32) {
    %c0_i32 = arith.constant 0 : i32
    %c0_i32_0 = arith.constant 0 : i32
    return %arg0, %c0_i32 : i32, i32
  }
  func.func @transform_1(%arg0: i32) -> (i32, i32) {
    %c0_i32 = arith.constant 0 : i32
    %c0_i32_0 = arith.constant 0 : i32
    %c0_i32_1 = arith.constant 0 : i32
    return %c0_i32, %c0_i32_0 : i32, i32
  }
  func.func @transform_2(%arg0: i32) -> (i32, i32) {
    %c0_i32 = arith.constant 0 : i32
    %c0_i32_0 = arith.constant 0 : i32
    %c0_i32_1 = arith.constant 0 : i32
    return %c0_i32, %c0_i32_0 : i32, i32
  }
  func.func @transform_3(%arg0: i32) -> (i32, i32) {
    %c0_i32 = arith.constant 0 : i32
    %c0_i32_0 = arith.constant 0 : i32
    %c0_i32_1 = arith.constant 0 : i32
    return %c0_i32, %c0_i32_0 : i32, i32
  }
  func.func @transform_4(%arg0: i32) -> (i32, i32) {
    %c0_i32 = arith.constant 0 : i32
    %c0_i32_0 = arith.constant 0 : i32
    %c0_i32_1 = arith.constant 0 : i32
    return %c0_i32, %c0_i32_0 : i32, i32
  }
  func.func @transform_5(%arg0: i32) -> (i32, i32) {
    %c0_i32 = arith.constant 0 : i32
    %c0_i32_0 = arith.constant 0 : i32
    %c0_i32_1 = arith.constant 0 : i32
    return %c0_i32, %c0_i32_0 : i32, i32
  }
  func.func @transform_6(%arg0: i32) -> (i32, i32) {
    %c0_i32 = arith.constant 0 : i32
    %c0_i32_0 = arith.constant 0 : i32
    %c0_i32_1 = arith.constant 0 : i32
    return %c0_i32, %c0_i32_0 : i32, i32
  }
  func.func @transform_7(%arg0: i32) -> (i32, i32) {
    %c0_i32 = arith.constant 0 : i32
    %c0_i32_0 = arith.constant 0 : i32
    %c0_i32_1 = arith.constant 0 : i32
    return %c0_i32, %c0_i32_0 : i32, i32
  }
  func.func @transform_8(%arg0: i32) -> (i32, i32) {
    %c0_i32 = arith.constant 0 : i32
    %c0_i32_0 = arith.constant 0 : i32
    %c0_i32_1 = arith.constant 0 : i32
    return %c0_i32, %c0_i32_0 : i32, i32
  }
  func.func @transform_9(%arg0: i32) -> (i32, i32) {
    %c0_i32 = arith.constant 0 : i32
    %c0_i32_0 = arith.constant 0 : i32
    %c0_i32_1 = arith.constant 0 : i32
    return %c0_i32, %c0_i32_0 : i32, i32
  }
  func.func @transform_10(%arg0: i32) -> (i32, i32) {
    %c0_i32 = arith.constant 0 : i32
    %c0_i32_0 = arith.constant 0 : i32
    %c0_i32_1 = arith.constant 0 : i32
    return %c0_i32, %c0_i32_0 : i32, i32
  }
  func.func @transform_11(%arg0: i32) -> (i32, i32) {
    %c0_i32 = arith.constant 0 : i32
    %c0_i32_0 = arith.constant 0 : i32
    return %arg0, %c0_i32 : i32, i32
  }
}

</mosaic_0001>

<llo_original>
// kernel: tpu_custom_call.1
$region0: #{tpu_custom_call.1}
  #allocation0 [shape = 'u32[]', space=smem, size = 0x4, offset = 0x4, fixed_abs, tag = 'smem constant byte address 0x4 - core index']
  #allocation1 [shape = 'u32[72,128]{1,0:T(1,128)}', space=vmem, size = 0x9000, scoped, tag = 'internal scratch']
  %s0 = inlined_call_operand.hbm [shape: f32[8,128], index: 0, kind: input, shape index: {}]
  %s1 = inlined_call_operand.hbm [shape: bf16[128,256], index: 1, kind: input, shape index: {}]
  %s2 = inlined_call_operand.hbm [shape: f32[1,256], index: 2, kind: input, shape index: {}]
  %s3 = inlined_call_operand.hbm [shape: bf16[256,256], index: 3, kind: input, shape index: {}]
  %s4 = inlined_call_operand.vmem [shape: f32[1,256], index: 4, kind: input, shape index: {}]
  %s5 = inlined_call_operand.hbm [shape: bf16[256,256], index: 5, kind: input, shape index: {}]
  %s6 = inlined_call_operand.vmem [shape: f32[1,256], index: 6, kind: input, shape index: {}]
  %s7 = inlined_call_operand.hbm [shape: bf16[256,256], index: 7, kind: input, shape index: {}]
  %s8 = inlined_call_operand.vmem [shape: f32[1,256], index: 8, kind: input, shape index: {}]
  %s9 = inlined_call_operand.hbm [shape: bf16[256,128], index: 9, kind: input, shape index: {}]
  %s10 = inlined_call_operand.vmem [shape: f32[1,128], index: 10, kind: input, shape index: {}]
  %s11 = inlined_call_operand.hbm [shape: f32[8,128], index: 11, kind: output, shape index: {}]
  %s12 = sld [smem:[#allocation0]]
  $region82: #{tpu_custom_call.1} parent=0
    _
  %s14 = ssub.s32 1, %s12
  %s15 = scalar_select 0, %s14, %s12
  $region1: #{tpu_custom_call.1} parent=0
    #allocation2 [shape = 'u8[4096]{0}', space=vmem, size = 0x1000, scoped, tag = 'input window, operand 0, single buffered']
    #allocation3 [shape = 's32[1]{0}', space=sflag, size = 0x4, scoped, tag = 'scoped memory for tpu_custom_call.1']
    #allocation4 [shape = 's32[1]{0}', space=sflag, size = 0x4, scoped, tag = 'scoped memory for tpu_custom_call.1']
    #allocation5 [shape = 'u8[65536]{0}', space=vmem, size = 0x10000, scoped, tag = 'input window, operand 1, single buffered']
    #allocation6 [shape = 's32[1]{0}', space=sflag, size = 0x4, scoped, tag = 'scoped memory for tpu_custom_call.1']
    #allocation7 [shape = 'u8[1024]{0}', space=vmem, size = 0x400, scoped, tag = 'input window, operand 2, single buffered']
    #allocation8 [shape = 'u8[131072]{0}', space=vmem, size = 0x20000, scoped, tag = 'input window, operand 3, single buffered']
    #allocation9 [shape = 's32[1]{0}', space=sflag, size = 0x4, scoped, tag = 'scoped memory for tpu_custom_call.1']
    #allocation10 [shape = 'u8[131072]{0}', space=vmem, size = 0x20000, scoped, tag = 'input window, operand 5, single buffered']
    #allocation11 [shape = 'u8[131072]{0}', space=vmem, size = 0x20000, scoped, tag = 'input window, operand 7, single buffered']
    #allocation12 [shape = 's32[1]{0}', space=sflag, size = 0x4, scoped, tag = 'scoped memory for tpu_custom_call.1']
    #allocation13 [shape = 'u8[65536]{0}', space=vmem, size = 0x10000, scoped, tag = 'input window, operand 9, single buffered']
    #allocation14 [shape = 'u8[4096]{0}', space=vmem, size = 0x1000, scoped, tag = 'output window, operand 0, single buffered']
    %16 = vsyncpa [#allocation3], 0
    %17 = vsyncpa [#allocation6], 0
    %18 = vsyncpa [#allocation9], 0
    %19 = vsyncpa [#allocation12], 0
    %20 = vsyncpa [#allocation4], 0
    // Predicated region
    $region2: #{tpu_custom_call.1} parent=1 // pred_check
      _
    $region3: #{tpu_custom_call.1} parent=1 // pred_check_branch
      %22 = sbr.rel (0) target = $region5
    $region4: #{tpu_custom_call.1} parent=1 // pred_region
      %24 = vsyncadd [#allocation3], 0
      %s26 = sshll.u32 %s0, 4
      %s27 = int_to_ptr.hbm [resolvable:$true] %s26
      %s28 = sshll.u32 [#allocation2], 4
      %s29 = int_to_ptr.vmem [resolvable:$true] %s28
      %31 = dma.hbm_to_vmem [thread:$0]  %s27, 128, %s29, [#allocation3]
    $region5: #{tpu_custom_call.1} parent=1 // pred_fallthru
      _
    // Predicated region
    $region6: #{tpu_custom_call.1} parent=1 // pred_check
      _
    $region7: #{tpu_custom_call.1} parent=1 // pred_check_branch
      %33 = sbr.rel (0) target = $region9
    $region8: #{tpu_custom_call.1} parent=1 // pred_region
      %35 = vsyncadd [#allocation6], 0
      %s36 = sshll.u32 %s1, 4
      %s37 = int_to_ptr.hbm [resolvable:$true] %s36
      %s38 = sshll.u32 [#allocation5], 4
      %s39 = int_to_ptr.vmem [resolvable:$true] %s38
      %44 = dma.hbm_to_vmem [thread:$0]  %s37, 2048, %s39, [#allocation6], 128, 128, 8
    $region9: #{tpu_custom_call.1} parent=1 // pred_fallthru
      _
    // Predicated region
    $region10: #{tpu_custom_call.1} parent=1 // pred_check
      _
    $region11: #{tpu_custom_call.1} parent=1 // pred_check_branch
      %46 = sbr.rel (0) target = $region13
    $region12: #{tpu_custom_call.1} parent=1 // pred_region
      %48 = vsyncadd [#allocation6], 0
      %s50 = sshll.u32 %s2, 4
      %s51 = int_to_ptr.hbm [resolvable:$true] %s50
      %s52 = sshll.u32 [#allocation7], 4
      %s53 = int_to_ptr.vmem [resolvable:$true] %s52
      %55 = dma.hbm_to_vmem [thread:$0]  %s51, 32, %s53, [#allocation6]
    $region13: #{tpu_custom_call.1} parent=1 // pred_fallthru
      _
    // Predicated region
    $region14: #{tpu_custom_call.1} parent=1 // pred_check
      _
    $region15: #{tpu_custom_call.1} parent=1 // pred_check_branch
      %57 = sbr.rel (0) target = $region17
    $region16: #{tpu_custom_call.1} parent=1 // pred_region
      %59 = vsyncadd [#allocation9], 0
      %s60 = sshll.u32 %s3, 4
      %s61 = int_to_ptr.hbm [resolvable:$true] %s60
      %s62 = sshll.u32 [#allocation8], 4
      %s63 = int_to_ptr.vmem [resolvable:$true] %s62
      %68 = dma.hbm_to_vmem [thread:$0]  %s61, 4096, %s63, [#allocation9], 128, 128, 8
    $region17: #{tpu_custom_call.1} parent=1 // pred_fallthru
      _
    // Predicated region
    $region18: #{tpu_custom_call.1} parent=1 // pred_check
      _
    $region19: #{tpu_custom_call.1} parent=1 // pred_check_branch
      %70 = sbr.rel (0) target = $region21
    $region20: #{tpu_custom_call.1} parent=1 // pred_region
      _
    $region21: #{tpu_custom_call.1} parent=1 // pred_fallthru
      _
    // Predicated region
    $region22: #{tpu_custom_call.1} parent=1 // pred_check
      _
    $region23: #{tpu_custom_call.1} parent=1 // pred_check_branch
      %72 = sbr.rel (0) target = $region25
    $region24: #{tpu_custom_call.1} parent=1 // pred_region
      %74 = vsyncadd [#allocation9], 0
      %s75 = sshll.u32 %s5, 4
      %s76 = int_to_ptr.hbm [resolvable:$true] %s75
      %s77 = sshll.u32 [#allocation10], 4
      %s78 = int_to_ptr.vmem [resolvable:$true] %s77
      %83 = dma.hbm_to_vmem [thread:$0]  %s76, 4096, %s78, [#allocation9], 128, 128, 8
    $region25: #{tpu_custom_call.1} parent=1 // pred_fallthru
      _
    // Predicated region
    $region26: #{tpu_custom_call.1} parent=1 // pred_check
      _
    $region27: #{tpu_custom_call.1} parent=1 // pred_check_branch
      %85 = sbr.rel (0) target = $region29
    $region28: #{tpu_custom_call.1} parent=1 // pred_region
      _
    $region29: #{tpu_custom_call.1} parent=1 // pred_fallthru
      _
    // Predicated region
    $region30: #{tpu_custom_call.1} parent=1 // pred_check
      _
    $region31: #{tpu_custom_call.1} parent=1 // pred_check_branch
      %87 = sbr.rel (0) target = $region33
    $region32: #{tpu_custom_call.1} parent=1 // pred_region
      %89 = vsyncadd [#allocation12], 0
      %s90 = sshll.u32 %s7, 4
      %s91 = int_to_ptr.hbm [resolvable:$true] %s90
      %s92 = sshll.u32 [#allocation11], 4
      %s93 = int_to_ptr.vmem [resolvable:$true] %s92
      %98 = dma.hbm_to_vmem [thread:$0]  %s91, 4096, %s93, [#allocation12], 128, 128, 8
    $region33: #{tpu_custom_call.1} parent=1 // pred_fallthru
      _
    // Predicated region
    $region34: #{tpu_custom_call.1} parent=1 // pred_check
      _
    $region35: #{tpu_custom_call.1} parent=1 // pred_check_branch
      %100 = sbr.rel (0) target = $region37
    $region36: #{tpu_custom_call.1} parent=1 // pred_region
      _
    $region37: #{tpu_custom_call.1} parent=1 // pred_fallthru
      _
    // Predicated region
    $region38: #{tpu_custom_call.1} parent=1 // pred_check
      _
    $region39: #{tpu_custom_call.1} parent=1 // pred_check_branch
      %102 = sbr.rel (0) target = $region41
    $region40: #{tpu_custom_call.1} parent=1 // pred_region
      %104 = vsyncadd [#allocation12], 0
      %s105 = sshll.u32 %s9, 4
      %s106 = int_to_ptr.hbm [resolvable:$true] %s105
      %s107 = sshll.u32 [#allocation13], 4
      %s108 = int_to_ptr.vmem [resolvable:$true] %s107
      %113 = dma.hbm_to_vmem [thread:$0]  %s106, 2048, %s108, [#allocation12], 64, 64, 4
    $region41: #{tpu_custom_call.1} parent=1 // pred_fallthru
      _
    // Predicated region
    $region42: #{tpu_custom_call.1} parent=1 // pred_check
      _
    $region43: #{tpu_custom_call.1} parent=1 // pred_check_branch
      %115 = sbr.rel (0) target = $region45
    $region44: #{tpu_custom_call.1} parent=1 // pred_region
      _
    $region45: #{tpu_custom_call.1} parent=1 // pred_fallthru
      _
    // Predicated region
    $region46: #{tpu_custom_call.1} parent=1 // pred_check
      _
    $region47: #{tpu_custom_call.1} parent=1 // pred_check_branch
      %117 = sbr.rel (0) target = $region49
    $region48: #{tpu_custom_call.1} parent=1 // pred_region
      %119 = dma.done [#allocation3], 128
    $region49: #{tpu_custom_call.1} parent=1 // pred_fallthru
      _
    // Predicated region
    $region50: #{tpu_custom_call.1} parent=1 // pred_check
      _
    $region51: #{tpu_custom_call.1} parent=1 // pred_check_branch
      %121 = sbr.rel (0) target = $region53
    $region52: #{tpu_custom_call.1} parent=1 // pred_region
      %123 = dma.done [#allocation6], 2048
    $region53: #{tpu_custom_call.1} parent=1 // pred_fallthru
      _
    // Predicated region
    $region54: #{tpu_custom_call.1} parent=1 // pred_check
      _
    $region55: #{tpu_custom_call.1} parent=1 // pred_check_branch
      %125 = sbr.rel (0) target = $region57
    $region56: #{tpu_custom_call.1} parent=1 // pred_region
      %127 = dma.done [#allocation6], 32
    $region57: #{tpu_custom_call.1} parent=1 // pred_fallthru
      _
    // Predicated region
    $region58: #{tpu_custom_call.1} parent=1 // pred_check
      _
    $region59: #{tpu_custom_call.1} parent=1 // pred_check_branch
      %129 = sbr.rel (0) target = $region61
    $region60: #{tpu_custom_call.1} parent=1 // pred_region
      %131 = dma.done [#allocation9], 4096
    $region61: #{tpu_custom_call.1} parent=1 // pred_fallthru
      _
    // Predicated region
    $region62: #{tpu_custom_call.1} parent=1 // pred_check
      _
    $region63: #{tpu_custom_call.1} parent=1 // pred_check_branch
      %133 = sbr.rel (0) target = $region65
    $region64: #{tpu_custom_call.1} parent=1 // pred_region
      %135 = dma.done [#allocation9], 4096
    $region65: #{tpu_custom_call.1} parent=1 // pred_fallthru
      _
    // Predicated region
    $region66: #{tpu_custom_call.1} parent=1 // pred_check
      _
    $region67: #{tpu_custom_call.1} parent=1 // pred_check_branch
      %137 = sbr.rel (0) target = $region69
    $region68: #{tpu_custom_call.1} parent=1 // pred_region
      %139 = dma.done [#allocation12], 4096
    $region69: #{tpu_custom_call.1} parent=1 // pred_fallthru
      _
    // Predicated region
    $region70: #{tpu_custom_call.1} parent=1 // pred_check
      _
    $region71: #{tpu_custom_call.1} parent=1 // pred_check_branch
      %141 = sbr.rel (0) target = $region73
    $region72: #{tpu_custom_call.1} parent=1 // pred_region
      %143 = dma.done [#allocation12], 2048
    $region73: #{tpu_custom_call.1} parent=1 // pred_fallthru
      _
    %v144 = vld [vmem:[#allocation2] sm:$0xff]
    %v145 = vpack.c.bf16 %v144, %v144
    %v146 = vld [vmem:[#allocation5] sm:$0xff]
    %v147 = vld [vmem:[#allocation5 + $0x8] sm:$0xff]
    %v148 = vld [vmem:[#allocation5 + $0x10] sm:$0xff]
    %v149 = vld [vmem:[#allocation5 + $0x18] sm:$0xff]
    %v150 = vld [vmem:[#allocation5 + $0x20] sm:$0xff]
    %v151 = vld [vmem:[#allocation5 + $0x28] sm:$0xff]
    %v152 = vld [vmem:[#allocation5 + $0x30] sm:$0xff]
    %v153 = vld [vmem:[#allocation5 + $0x38] sm:$0xff]
    %v154 = vld [vmem:[#allocation5 + $0x40] sm:$0xff]
    %v155 = vld [vmem:[#allocation5 + $0x48] sm:$0xff]
    %v156 = vld [vmem:[#allocation5 + $0x50] sm:$0xff]
    %v157 = vld [vmem:[#allocation5 + $0x58] sm:$0xff]
    %v158 = vld [vmem:[#allocation5 + $0x60] sm:$0xff]
    %v159 = vld [vmem:[#allocation5 + $0x68] sm:$0xff]
    %v160 = vld [vmem:[#allocation5 + $0x70] sm:$0xff]
    %v161 = vld [vmem:[#allocation5 + $0x78] sm:$0xff]
    %v162 = vld [vmem:[#allocation7] sm:$0x3]
    %v164 = vperm.slane %v162, 0
    %v165 = vperm.slane %v162, 1
    %v184 = vunpack.c.l.b16 %v146
    %v185 = vunpack.c.h.b16 %v146
    %v186 = vunpack.c.l.b16 %v147
    %v187 = vunpack.c.h.b16 %v147
    %v188 = vunpack.c.l.b16 %v148
    %v189 = vunpack.c.h.b16 %v148
    %v190 = vunpack.c.l.b16 %v149
    %v191 = vunpack.c.h.b16 %v149
    %v192 = vunpack.c.l.b16 %v150
    %v193 = vunpack.c.h.b16 %v150
    %v194 = vunpack.c.l.b16 %v151
    %v195 = vunpack.c.h.b16 %v151
    %v196 = vunpack.c.l.b16 %v152
    %v197 = vunpack.c.h.b16 %v152
    %v198 = vunpack.c.l.b16 %v153
    %v199 = vunpack.c.h.b16 %v153
    %v200 = vunpack.c.l.b16 %v154
    %v201 = vunpack.c.h.b16 %v154
    %v202 = vunpack.c.l.b16 %v155
    %v203 = vunpack.c.h.b16 %v155
    %v204 = vunpack.c.l.b16 %v156
    %v205 = vunpack.c.h.b16 %v156
    %v206 = vunpack.c.l.b16 %v157
    %v207 = vunpack.c.h.b16 %v157
    %v208 = vunpack.c.l.b16 %v158
    %v209 = vunpack.c.h.b16 %v158
    %v210 = vunpack.c.l.b16 %v159
    %v211 = vunpack.c.h.b16 %v159
    %v212 = vunpack.c.l.b16 %v160
    %v213 = vunpack.c.h.b16 %v160
    %v214 = vunpack.c.l.b16 %v161
    %v215 = vunpack.c.h.b16 %v161
    %v216 = vpack.c.b16 %v186, %v184
    %v217 = vpack.c.b16 %v187, %v185
    %v218 = vpack.c.b16 %v190, %v188
    %v219 = vpack.c.b16 %v191, %v189
    %v220 = vpack.c.b16 %v194, %v192
    %v221 = vpack.c.b16 %v195, %v193
    %v222 = vpack.c.b16 %v198, %v196
    %v223 = vpack.c.b16 %v199, %v197
    %v224 = vpack.c.b16 %v202, %v200
    %v225 = vpack.c.b16 %v203, %v201
    %v226 = vpack.c.b16 %v206, %v204
    %v227 = vpack.c.b16 %v207, %v205
    %v228 = vpack.c.b16 %v210, %v208
    %v229 = vpack.c.b16 %v211, %v209
    %v230 = vpack.c.b16 %v214, %v212
    %v231 = vpack.c.b16 %v215, %v213
    %248 = vmatpush.bf16.msra.mxu0 %v230
    %249 = vmatpush.bf16.msra.mxu0 %v228
    %250 = vmatpush.bf16.msra.mxu0 %v226
    %251 = vmatpush.bf16.msra.mxu0 %v224
    %252 = vmatpush.bf16.msra.mxu0 %v222
    %253 = vmatpush.bf16.msra.mxu0 %v220
    %254 = vmatpush.bf16.msra.mxu0 %v218
    %255 = vmatpush.bf16.msra.mxu0 %v216
    %256 = vmatmul.bf16.gmra.mxu0 %v145
    %v257 = vpop.f32.mrf.mxu0
    %v258 = vadd.f32 %v164, %v257
    %v259 = vpop.f32.mrf.mxu0
    %260 = vdwg.mxu0
    %261 = vmatpush.bf16.msra.mxu0 %v231
    %262 = vmatpush.bf16.msra.mxu0 %v229
    %263 = vmatpush.bf16.msra.mxu0 %v227
    %264 = vmatpush.bf16.msra.mxu0 %v225
    %265 = vmatpush.bf16.msra.mxu0 %v223
    %266 = vmatpush.bf16.msra.mxu0 %v221
    %267 = vmatpush.bf16.msra.mxu0 %v219
    %268 = vmatpush.bf16.msra.mxu0 %v217
    %269 = vmatmul.bf16.gmra.mxu0 %v145
    %v270 = vpop.f32.mrf.mxu0
    %v271 = vadd.f32 %v165, %v270
    %v272 = vpop.f32.mrf.mxu0
    %273 = vdwg.mxu0
    %v274 = vpack.c.bf16 %v271, %v258
    %v275 = vunpack.c.l.bf16 %v274
    %v276 = vunpack.c.h.bf16 %v274
    %v277 = vmax.f32 %v275, 0.0
    %v278 = vmax.f32 %v276, 0.0
    %v279 = vpack.c.bf16 %v277, %v277
    %v280 = vpack.c.bf16 %v278, %v278
    %v281 = vld [vmem:[#allocation8] sm:$0xff]
    %v282 = vld [vmem:[#allocation8 + $0x8] sm:$0xff]
    %v283 = vld [vmem:[#allocation8 + $0x10] sm:$0xff]
    %v284 = vld [vmem:[#allocation8 + $0x18] sm:$0xff]
    %v285 = vld [vmem:[#allocation8 + $0x20] sm:$0xff]
    %v286 = vld [vmem:[#allocation8 + $0x28] sm:$0xff]
    %v287 = vld [vmem:[#allocation8 + $0x30] sm:$0xff]
    %v288 = vld [vmem:[#allocation8 + $0x38] sm:$0xff]
    %v289 = vld [vmem:[#allocation8 + $0x40] sm:$0xff]
    %v290 = vld [vmem:[#allocation8 + $0x48] sm:$0xff]
    %v291 = vld [vmem:[#allocation8 + $0x50] sm:$0xff]
    %v292 = vld [vmem:[#allocation8 + $0x58] sm:$0xff]
    %v293 = vld [vmem:[#allocation8 + $0x60] sm:$0xff]
    %v294 = vld [vmem:[#allocation8 + $0x68] sm:$0xff]
    %v295 = vld [vmem:[#allocation8 + $0x70] sm:$0xff]
    %v296 = vld [vmem:[#allocation8 + $0x78] sm:$0xff]
    %v297 = vld [vmem:[#allocation8 + $0x80] sm:$0xff]
    %v298 = vld [vmem:[#allocation8 + $0x88] sm:$0xff]
    %v299 = vld [vmem:[#allocation8 + $0x90] sm:$0xff]
    %v300 = vld [vmem:[#allocation8 + $0x98] sm:$0xff]
    %v301 = vld [vmem:[#allocation8 + $0xa0] sm:$0xff]
    %v302 = vld [vmem:[#allocation8 + $0xa8] sm:$0xff]
    %v303 = vld [vmem:[#allocation8 + $0xb0] sm:$0xff]
    %v304 = vld [vmem:[#allocation8 + $0xb8] sm:$0xff]
    %v305 = vld [vmem:[#allocation8 + $0xc0] sm:$0xff]
    %v306 = vld [vmem:[#allocation8 + $0xc8] sm:$0xff]
    %v307 = vld [vmem:[#allocation8 + $0xd0] sm:$0xff]
    %v308 = vld [vmem:[#allocation8 + $0xd8] sm:$0xff]
    %v309 = vld [vmem:[#allocation8 + $0xe0] sm:$0xff]
    %v310 = vld [vmem:[#allocation8 + $0xe8] sm:$0xff]
    %v311 = vld [vmem:[#allocation8 + $0xf0] sm:$0xff]
    %v312 = vld [vmem:[#allocation8 + $0xf8] sm:$0xff]
    %v313 = vld [vmem:[%s4] sm:$0x3]
    %v315 = vperm.slane %v313, 0
    %v316 = vperm.slane %v313, 1
    %v351 = vunpack.c.l.b16 %v281
    %v352 = vunpack.c.h.b16 %v281
    %v353 = vunpack.c.l.b16 %v282
    %v354 = vunpack.c.h.b16 %v282
    %v355 = vunpack.c.l.b16 %v283
    %v356 = vunpack.c.h.b16 %v283
    %v357 = vunpack.c.l.b16 %v284
    %v358 = vunpack.c.h.b16 %v284
    %v359 = vunpack.c.l.b16 %v285
    %v360 = vunpack.c.h.b16 %v285
    %v361 = vunpack.c.l.b16 %v286
    %v362 = vunpack.c.h.b16 %v286
    %v363 = vunpack.c.l.b16 %v287
    %v364 = vunpack.c.h.b16 %v287
    %v365 = vunpack.c.l.b16 %v288
    %v366 = vunpack.c.h.b16 %v288
    %v367 = vunpack.c.l.b16 %v289
    %v368 = vunpack.c.h.b16 %v289
    %v369 = vunpack.c.l.b16 %v290
    %v370 = vunpack.c.h.b16 %v290
    %v371 = vunpack.c.l.b16 %v291
    %v372 = vunpack.c.h.b16 %v291
    %v373 = vunpack.c.l.b16 %v292
    %v374 = vunpack.c.h.b16 %v292
    %v375 = vunpack.c.l.b16 %v293
    %v376 = vunpack.c.h.b16 %v293
    %v377 = vunpack.c.l.b16 %v294
    %v378 = vunpack.c.h.b16 %v294
    %v379 = vunpack.c.l.b16 %v295
    %v380 = vunpack.c.h.b16 %v295
    %v381 = vunpack.c.l.b16 %v296
    %v382 = vunpack.c.h.b16 %v296
    %v383 = vunpack.c.l.b16 %v297
    %v384 = vunpack.c.h.b16 %v297
    %v385 = vunpack.c.l.b16 %v298
    %v386 = vunpack.c.h.b16 %v298
    %v387 = vunpack.c.l.b16 %v299
    %v388 = vunpack.c.h.b16 %v299
    %v389 = vunpack.c.l.b16 %v300
    %v390 = vunpack.c.h.b16 %v300
    %v391 = vunpack.c.l.b16 %v301
    %v392 = vunpack.c.h.b16 %v301
    %v393 = vunpack.c.l.b16 %v302
    %v394 = vunpack.c.h.b16 %v302
    %v395 = vunpack.c.l.b16 %v303
    %v396 = vunpack.c.h.b16 %v303
    %v397 = vunpack.c.l.b16 %v304
    %v398 = vunpack.c.h.b16 %v304
    %v399 = vunpack.c.l.b16 %v305
    %v400 = vunpack.c.h.b16 %v305
    %v401 = vunpack.c.l.b16 %v306
    %v402 = vunpack.c.h.b16 %v306
    %v403 = vunpack.c.l.b16 %v307
    %v404 = vunpack.c.h.b16 %v307
    %v405 = vunpack.c.l.b16 %v308
    %v406 = vunpack.c.h.b16 %v308
    %v407 = vunpack.c.l.b16 %v309
    %v408 = vunpack.c.h.b16 %v309
    %v409 = vunpack.c.l.b16 %v310
    %v410 = vunpack.c.h.b16 %v310
    %v411 = vunpack.c.l.b16 %v311
    %v412 = vunpack.c.h.b16 %v311
    %v413 = vunpack.c.l.b16 %v312
    %v414 = vunpack.c.h.b16 %v312
    %v415 = vpack.c.b16 %v353, %v351
    %v416 = vpack.c.b16 %v354, %v352
    %v417 = vpack.c.b16 %v357, %v355
    %v418 = vpack.c.b16 %v358, %v356
    %v419 = vpack.c.b16 %v361, %v359
    %v420 = vpack.c.b16 %v362, %v360
    %v421 = vpack.c.b16 %v365, %v363
    %v422 = vpack.c.b16 %v366, %v364
    %v423 = vpack.c.b16 %v369, %v367
    %v424 = vpack.c.b16 %v370, %v368
    %v425 = vpack.c.b16 %v373, %v371
    %v426 = vpack.c.b16 %v374, %v372
    %v427 = vpack.c.b16 %v377, %v375
    %v428 = vpack.c.b16 %v378, %v376
    %v429 = vpack.c.b16 %v381, %v379
    %v430 = vpack.c.b16 %v382, %v380
    %v431 = vpack.c.b16 %v385, %v383
    %v432 = vpack.c.b16 %v386, %v384
    %v433 = vpack.c.b16 %v389, %v387
    %v434 = vpack.c.b16 %v390, %v388
    %v435 = vpack.c.b16 %v393, %v391
    %v436 = vpack.c.b16 %v394, %v392
    %v437 = vpack.c.b16 %v397, %v395
    %v438 = vpack.c.b16 %v398, %v396
    %v439 = vpack.c.b16 %v401, %v399
    %v440 = vpack.c.b16 %v402, %v400
    %v441 = vpack.c.b16 %v405, %v403
    %v442 = vpack.c.b16 %v406, %v404
    %v443 = vpack.c.b16 %v409, %v407
    %v444 = vpack.c.b16 %v410, %v408
    %v445 = vpack.c.b16 %v413, %v411
    %v446 = vpack.c.b16 %v414, %v412
    %479 = vmatpush.bf16.msra.mxu0 %v429
    %480 = vmatpush.bf16.msra.mxu0 %v427
    %481 = vmatpush.bf16.msra.mxu0 %v425
    %482 = vmatpush.bf16.msra.mxu0 %v423
    %483 = vmatpush.bf16.msra.mxu0 %v421
    %484 = vmatpush.bf16.msra.mxu0 %v419
    %485 = vmatpush.bf16.msra.mxu0 %v417
    %486 = vmatpush.bf16.msra.mxu0 %v415
    %487 = vmatmul.bf16.gmra.mxu0 %v279
    %v488 = vpop.f32.mrf.mxu0
    %v489 = vadd.f32 %v315, %v488
    %v490 = vpop.f32.mrf.mxu0
    %491 = vdwg.mxu0
    %492 = vmatpush.bf16.msra.mxu0 %v445
    %493 = vmatpush.bf16.msra.mxu0 %v443
    %494 = vmatpush.bf16.msra.mxu0 %v441
    %495 = vmatpush.bf16.msra.mxu0 %v439
    %496 = vmatpush.bf16.msra.mxu0 %v437
    %497 = vmatpush.bf16.msra.mxu0 %v435
    %498 = vmatpush.bf16.msra.mxu0 %v433
    %499 = vmatpush.bf16.msra.mxu0 %v431
    %500 = vmatmul.bf16.gmra.mxu0 %v280
    %v501 = vpop.f32.mrf.mxu0
    %v502 = vadd.f32 %v489, %v501
    %v503 = vpop.f32.mrf.mxu0
    %504 = vdwg.mxu0
    %505 = vmatpush.bf16.msra.mxu0 %v430
    %506 = vmatpush.bf16.msra.mxu0 %v428
    %507 = vmatpush.bf16.msra.mxu0 %v426
    %508 = vmatpush.bf16.msra.mxu0 %v424
    %509 = vmatpush.bf16.msra.mxu0 %v422
    %510 = vmatpush.bf16.msra.mxu0 %v420
    %511 = vmatpush.bf16.msra.mxu0 %v418
    %512 = vmatpush.bf16.msra.mxu0 %v416
    %513 = vmatmul.bf16.gmra.mxu0 %v279
    %v514 = vpop.f32.mrf.mxu0
    %v515 = vadd.f32 %v316, %v514
    %v516 = vpop.f32.mrf.mxu0
    %517 = vdwg.mxu0
    %518 = vmatpush.bf16.msra.mxu0 %v446
    %519 = vmatpush.bf16.msra.mxu0 %v444
    %520 = vmatpush.bf16.msra.mxu0 %v442
    %521 = vmatpush.bf16.msra.mxu0 %v440
    %522 = vmatpush.bf16.msra.mxu0 %v438
    %523 = vmatpush.bf16.msra.mxu0 %v436
    %524 = vmatpush.bf16.msra.mxu0 %v434
    %525 = vmatpush.bf16.msra.mxu0 %v432
    %526 = vmatmul.bf16.gmra.mxu0 %v280
    %v527 = vpop.f32.mrf.mxu0
    %v528 = vadd.f32 %v515, %v527
    %v529 = vpop.f32.mrf.mxu0
    %530 = vdwg.mxu0
    %v531 = vpack.c.bf16 %v528, %v502
    %v532 = vunpack.c.l.bf16 %v531
    %v533 = vunpack.c.h.bf16 %v531
    %v534 = vmax.f32 %v532, 0.0
    %v535 = vmax.f32 %v533, 0.0
    %v536 = vpack.c.bf16 %v534, %v534
    %v537 = vpack.c.bf16 %v535, %v535
    %v538 = vld [vmem:[#allocation10] sm:$0xff]
    %v539 = vld [vmem:[#allocation10 + $0x8] sm:$0xff]
    %v540 = vld [vmem:[#allocation10 + $0x10] sm:$0xff]
    %v541 = vld [vmem:[#allocation10 + $0x18] sm:$0xff]
    %v542 = vld [vmem:[#allocation10 + $0x20] sm:$0xff]
    %v543 = vld [vmem:[#allocation10 + $0x28] sm:$0xff]
    %v544 = vld [vmem:[#allocation10 + $0x30] sm:$0xff]
    %v545 = vld [vmem:[#allocation10 + $0x38] sm:$0xff]
    %v546 = vld [vmem:[#allocation10 + $0x40] sm:$0xff]
    %v547 = vld [vmem:[#allocation10 + $0x48] sm:$0xff]
    %v548 = vld [vmem:[#allocation10 + $0x50] sm:$0xff]
    %v549 = vld [vmem:[#allocation10 + $0x58] sm:$0xff]
    %v550 = vld [vmem:[#allocation10 + $0x60] sm:$0xff]
    %v551 = vld [vmem:[#allocation10 + $0x68] sm:$0xff]
    %v552 = vld [vmem:[#allocation10 + $0x70] sm:$0xff]
    %v553 = vld [vmem:[#allocation10 + $0x78] sm:$0xff]
    %v554 = vld [vmem:[#allocation10 + $0x80] sm:$0xff]
    %v555 = vld [vmem:[#allocation10 + $0x88] sm:$0xff]
    %v556 = vld [vmem:[#allocation10 + $0x90] sm:$0xff]
    %v557 = vld [vmem:[#allocation10 + $0x98] sm:$0xff]
    %v558 = vld [vmem:[#allocation10 + $0xa0] sm:$0xff]
    %v559 = vld [vmem:[#allocation10 + $0xa8] sm:$0xff]
    %v560 = vld [vmem:[#allocation10 + $0xb0] sm:$0xff]
    %v561 = vld [vmem:[#allocation10 + $0xb8] sm:$0xff]
    %v562 = vld [vmem:[#allocation10 + $0xc0] sm:$0xff]
    %v563 = vld [vmem:[#allocation10 + $0xc8] sm:$0xff]
    %v564 = vld [vmem:[#allocation10 + $0xd0] sm:$0xff]
    %v565 = vld [vmem:[#allocation10 + $0xd8] sm:$0xff]
    %v566 = vld [vmem:[#allocation10 + $0xe0] sm:$0xff]
    %v567 = vld [vmem:[#allocation10 + $0xe8] sm:$0xff]
    %v568 = vld [vmem:[#allocation10 + $0xf0] sm:$0xff]
    %v569 = vld [vmem:[#allocation10 + $0xf8] sm:$0xff]
    %v570 = vld [vmem:[%s6] sm:$0x3]
    %v572 = vperm.slane %v570, 0
    %v573 = vperm.slane %v570, 1
    %v608 = vunpack.c.l.b16 %v538
    %v609 = vunpack.c.h.b16 %v538
    %v610 = vunpack.c.l.b16 %v539
    %v611 = vunpack.c.h.b16 %v539
    %v612 = vunpack.c.l.b16 %v540
    %v613 = vunpack.c.h.b16 %v540
    %v614 = vunpack.c.l.b16 %v541
    %v615 = vunpack.c.h.b16 %v541
    %v616 = vunpack.c.l.b16 %v542
    %v617 = vunpack.c.h.b16 %v542
    %v618 = vunpack.c.l.b16 %v543
    %v619 = vunpack.c.h.b16 %v543
    %v620 = vunpack.c.l.b16 %v544
    %v621 = vunpack.c.h.b16 %v544
    %v622 = vunpack.c.l.b16 %v545
    %v623 = vunpack.c.h.b16 %v545
    %v624 = vunpack.c.l.b16 %v546
    %v625 = vunpack.c.h.b16 %v546
    %v626 = vunpack.c.l.b16 %v547
    %v627 = vunpack.c.h.b16 %v547
    %v628 = vunpack.c.l.b16 %v548
    %v629 = vunpack.c.h.b16 %v548
    %v630 = vunpack.c.l.b16 %v549
    %v631 = vunpack.c.h.b16 %v549
    %v632 = vunpack.c.l.b16 %v550
    %v633 = vunpack.c.h.b16 %v550
    %v634 = vunpack.c.l.b16 %v551
    %v635 = vunpack.c.h.b16 %v551
    %v636 = vunpack.c.l.b16 %v552
    %v637 = vunpack.c.h.b16 %v552
    %v638 = vunpack.c.l.b16 %v553
    %v639 = vunpack.c.h.b16 %v553
    %v640 = vunpack.c.l.b16 %v554
    %v641 = vunpack.c.h.b16 %v554
    %v642 = vunpack.c.l.b16 %v555
    %v643 = vunpack.c.h.b16 %v555
    %v644 = vunpack.c.l.b16 %v556
    %v645 = vunpack.c.h.b16 %v556
    %v646 = vunpack.c.l.b16 %v557
    %v647 = vunpack.c.h.b16 %v557
    %v648 = vunpack.c.l.b16 %v558
    %v649 = vunpack.c.h.b16 %v558
    %v650 = vunpack.c.l.b16 %v559
    %v651 = vunpack.c.h.b16 %v559
    %v652 = vunpack.c.l.b16 %v560
    %v653 = vunpack.c.h.b16 %v560
    %v654 = vunpack.c.l.b16 %v561
    %v655 = vunpack.c.h.b16 %v561
    %v656 = vunpack.c.l.b16 %v562
    %v657 = vunpack.c.h.b16 %v562
    %v658 = vunpack.c.l.b16 %v563
    %v659 = vunpack.c.h.b16 %v563
    %v660 = vunpack.c.l.b16 %v564
    %v661 = vunpack.c.h.b16 %v564
    %v662 = vunpack.c.l.b16 %v565
    %v663 = vunpack.c.h.b16 %v565
    %v664 = vunpack.c.l.b16 %v566
    %v665 = vunpack.c.h.b16 %v566
    %v666 = vunpack.c.l.b16 %v567
    %v667 = vunpack.c.h.b16 %v567
    %v668 = vunpack.c.l.b16 %v568
    %v669 = vunpack.c.h.b16 %v568
    %v670 = vunpack.c.l.b16 %v569
    %v671 = vunpack.c.h.b16 %v569
    %v672 = vpack.c.b16 %v610, %v608
    %v673 = vpack.c.b16 %v611, %v609
    %v674 = vpack.c.b16 %v614, %v612
    %v675 = vpack.c.b16 %v615, %v613
    %v676 = vpack.c.b16 %v618, %v616
    %v677 = vpack.c.b16 %v619, %v617
    %v678 = vpack.c.b16 %v622, %v620
    %v679 = vpack.c.b16 %v623, %v621
    %v680 = vpack.c.b16 %v626, %v624
    %v681 = vpack.c.b16 %v627, %v625
    %v682 = vpack.c.b16 %v630, %v628
    %v683 = vpack.c.b16 %v631, %v629
    %v684 = vpack.c.b16 %v634, %v632
    %v685 = vpack.c.b16 %v635, %v633
    %v686 = vpack.c.b16 %v638, %v636
    %v687 = vpack.c.b16 %v639, %v637
    %v688 = vpack.c.b16 %v642, %v640
    %v689 = vpack.c.b16 %v643, %v641
    %v690 = vpack.c.b16 %v646, %v644
    %v691 = vpack.c.b16 %v647, %v645
    %v692 = vpack.c.b16 %v650, %v648
    %v693 = vpack.c.b16 %v651, %v649
    %v694 = vpack.c.b16 %v654, %v652
    %v695 = vpack.c.b16 %v655, %v653
    %v696 = vpack.c.b16 %v658, %v656
    %v697 = vpack.c.b16 %v659, %v657
    %v698 = vpack.c.b16 %v662, %v660
    %v699 = vpack.c.b16 %v663, %v661
    %v700 = vpack.c.b16 %v666, %v664
    %v701 = vpack.c.b16 %v667, %v665
    %v702 = vpack.c.b16 %v670, %v668
    %v703 = vpack.c.b16 %v671, %v669
    %736 = vmatpush.bf16.msra.mxu0 %v686
    %737 = vmatpush.bf16.msra.mxu0 %v684
    %738 = vmatpush.bf16.msra.mxu0 %v682
    %739 = vmatpush.bf16.msra.mxu0 %v680
    %740 = vmatpush.bf16.msra.mxu0 %v678
    %741 = vmatpush.bf16.msra.mxu0 %v676
    %742 = vmatpush.bf16.msra.mxu0 %v674
    %743 = vmatpush.bf16.msra.mxu0 %v672
    %744 = vmatmul.bf16.gmra.mxu0 %v536
    %v745 = vpop.f32.mrf.mxu0
    %v746 = vadd.f32 %v572, %v745
    %v747 = vpop.f32.mrf.mxu0
    %748 = vdwg.mxu0
    %749 = vmatpush.bf16.msra.mxu0 %v702
    %750 = vmatpush.bf16.msra.mxu0 %v700
    %751 = vmatpush.bf16.msra.mxu0 %v698
    %752 = vmatpush.bf16.msra.mxu0 %v696
    %753 = vmatpush.bf16.msra.mxu0 %v694
    %754 = vmatpush.bf16.msra.mxu0 %v692
    %755 = vmatpush.bf16.msra.mxu0 %v690
    %756 = vmatpush.bf16.msra.mxu0 %v688
    %757 = vmatmul.bf16.gmra.mxu0 %v537
    %v758 = vpop.f32.mrf.mxu0
    %v759 = vadd.f32 %v746, %v758
    %v760 = vpop.f32.mrf.mxu0
    %761 = vdwg.mxu0
    %762 = vmatpush.bf16.msra.mxu0 %v687
    %763 = vmatpush.bf16.msra.mxu0 %v685
    %764 = vmatpush.bf16.msra.mxu0 %v683
    %765 = vmatpush.bf16.msra.mxu0 %v681
    %766 = vmatpush.bf16.msra.mxu0 %v679
    %767 = vmatpush.bf16.msra.mxu0 %v677
    %768 = vmatpush.bf16.msra.mxu0 %v675
    %769 = vmatpush.bf16.msra.mxu0 %v673
    %770 = vmatmul.bf16.gmra.mxu0 %v536
    %v771 = vpop.f32.mrf.mxu0
    %v772 = vadd.f32 %v573, %v771
    %v773 = vpop.f32.mrf.mxu0
    %774 = vdwg.mxu0
    %775 = vmatpush.bf16.msra.mxu0 %v703
    %776 = vmatpush.bf16.msra.mxu0 %v701
    %777 = vmatpush.bf16.msra.mxu0 %v699
    %778 = vmatpush.bf16.msra.mxu0 %v697
    %779 = vmatpush.bf16.msra.mxu0 %v695
    %780 = vmatpush.bf16.msra.mxu0 %v693
    %781 = vmatpush.bf16.msra.mxu0 %v691
    %782 = vmatpush.bf16.msra.mxu0 %v689
    %783 = vmatmul.bf16.gmra.mxu0 %v537
    %v784 = vpop.f32.mrf.mxu0
    %v785 = vadd.f32 %v772, %v784
    %v786 = vpop.f32.mrf.mxu0
    %787 = vdwg.mxu0
    %v788 = vpack.c.bf16 %v785, %v759
    %v789 = vunpack.c.l.bf16 %v788
    %v790 = vunpack.c.h.bf16 %v788
    %v791 = vmax.f32 %v789, 0.0
    %v792 = vmax.f32 %v790, 0.0
    %v793 = vpack.c.bf16 %v791, %v791
    %v794 = vpack.c.bf16 %v792, %v792
    %v795 = vld [vmem:[#allocation11] sm:$0xff]
    %v796 = vld [vmem:[#allocation11 + $0x8] sm:$0xff]
    %v797 = vld [vmem:[#allocation11 + $0x10] sm:$0xff]
    %v798 = vld [vmem:[#allocation11 + $0x18] sm:$0xff]
    %v799 = vld [vmem:[#allocation11 + $0x20] sm:$0xff]
    %v800 = vld [vmem:[#allocation11 + $0x28] sm:$0xff]
    %v801 = vld [vmem:[#allocation11 + $0x30] sm:$0xff]
    %v802 = vld [vmem:[#allocation11 + $0x38] sm:$0xff]
    %v803 = vld [vmem:[#allocation11 + $0x40] sm:$0xff]
    %v804 = vld [vmem:[#allocation11 + $0x48] sm:$0xff]
    %v805 = vld [vmem:[#allocation11 + $0x50] sm:$0xff]
    %v806 = vld [vmem:[#allocation11 + $0x58] sm:$0xff]
    %v807 = vld [vmem:[#allocation11 + $0x60] sm:$0xff]
    %v808 = vld [vmem:[#allocation11 + $0x68] sm:$0xff]
    %v809 = vld [vmem:[#allocation11 + $0x70] sm:$0xff]
    %v810 = vld [vmem:[#allocation11 + $0x78] sm:$0xff]
    %v811 = vld [vmem:[#allocation11 + $0x80] sm:$0xff]
    %v812 = vld [vmem:[#allocation11 + $0x88] sm:$0xff]
    %v813 = vld [vmem:[#allocation11 + $0x90] sm:$0xff]
    %v814 = vld [vmem:[#allocation11 + $0x98] sm:$0xff]
    %v815 = vld [vmem:[#allocation11 + $0xa0] sm:$0xff]
    %v816 = vld [vmem:[#allocation11 + $0xa8] sm:$0xff]
    %v817 = vld [vmem:[#allocation11 + $0xb0] sm:$0xff]
    %v818 = vld [vmem:[#allocation11 + $0xb8] sm:$0xff]
    %v819 = vld [vmem:[#allocation11 + $0xc0] sm:$0xff]
    %v820 = vld [vmem:[#allocation11 + $0xc8] sm:$0xff]
    %v821 = vld [vmem:[#allocation11 + $0xd0] sm:$0xff]
    %v822 = vld [vmem:[#allocation11 + $0xd8] sm:$0xff]
    %v823 = vld [vmem:[#allocation11 + $0xe0] sm:$0xff]
    %v824 = vld [vmem:[#allocation11 + $0xe8] sm:$0xff]
    %v825 = vld [vmem:[#allocation11 + $0xf0] sm:$0xff]
    %v826 = vld [vmem:[#allocation11 + $0xf8] sm:$0xff]
    %v827 = vld [vmem:[%s8] sm:$0x3]
    %v829 = vperm.slane %v827, 0
    %v830 = vperm.slane %v827, 1
    %v865 = vunpack.c.l.b16 %v795
    %v866 = vunpack.c.h.b16 %v795
    %v867 = vunpack.c.l.b16 %v796
    %v868 = vunpack.c.h.b16 %v796
    %v869 = vunpack.c.l.b16 %v797
    %v870 = vunpack.c.h.b16 %v797
    %v871 = vunpack.c.l.b16 %v798
    %v872 = vunpack.c.h.b16 %v798
    %v873 = vunpack.c.l.b16 %v799
    %v874 = vunpack.c.h.b16 %v799
    %v875 = vunpack.c.l.b16 %v800
    %v876 = vunpack.c.h.b16 %v800
    %v877 = vunpack.c.l.b16 %v801
    %v878 = vunpack.c.h.b16 %v801
    %v879 = vunpack.c.l.b16 %v802
    %v880 = vunpack.c.h.b16 %v802
    %v881 = vunpack.c.l.b16 %v803
    %v882 = vunpack.c.h.b16 %v803
    %v883 = vunpack.c.l.b16 %v804
    %v884 = vunpack.c.h.b16 %v804
    %v885 = vunpack.c.l.b16 %v805
    %v886 = vunpack.c.h.b16 %v805
    %v887 = vunpack.c.l.b16 %v806
    %v888 = vunpack.c.h.b16 %v806
    %v889 = vunpack.c.l.b16 %v807
    %v890 = vunpack.c.h.b16 %v807
    %v891 = vunpack.c.l.b16 %v808
    %v892 = vunpack.c.h.b16 %v808
    %v893 = vunpack.c.l.b16 %v809
    %v894 = vunpack.c.h.b16 %v809
    %v895 = vunpack.c.l.b16 %v810
    %v896 = vunpack.c.h.b16 %v810
    %v897 = vunpack.c.l.b16 %v811
    %v898 = vunpack.c.h.b16 %v811
    %v899 = vunpack.c.l.b16 %v812
    %v900 = vunpack.c.h.b16 %v812
    %v901 = vunpack.c.l.b16 %v813
    %v902 = vunpack.c.h.b16 %v813
    %v903 = vunpack.c.l.b16 %v814
    %v904 = vunpack.c.h.b16 %v814
    %v905 = vunpack.c.l.b16 %v815
    %v906 = vunpack.c.h.b16 %v815
    %v907 = vunpack.c.l.b16 %v816
    %v908 = vunpack.c.h.b16 %v816
    %v909 = vunpack.c.l.b16 %v817
    %v910 = vunpack.c.h.b16 %v817
    %v911 = vunpack.c.l.b16 %v818
    %v912 = vunpack.c.h.b16 %v818
    %v913 = vunpack.c.l.b16 %v819
    %v914 = vunpack.c.h.b16 %v819
    %v915 = vunpack.c.l.b16 %v820
    %v916 = vunpack.c.h.b16 %v820
    %v917 = vunpack.c.l.b16 %v821
    %v918 = vunpack.c.h.b16 %v821
    %v919 = vunpack.c.l.b16 %v822
    %v920 = vunpack.c.h.b16 %v822
    %v921 = vunpack.c.l.b16 %v823
    %v922 = vunpack.c.h.b16 %v823
    %v923 = vunpack.c.l.b16 %v824
    %v924 = vunpack.c.h.b16 %v824
    %v925 = vunpack.c.l.b16 %v825
    %v926 = vunpack.c.h.b16 %v825
    %v927 = vunpack.c.l.b16 %v826
    %v928 = vunpack.c.h.b16 %v826
    %v929 = vpack.c.b16 %v867, %v865
    %v930 = vpack.c.b16 %v868, %v866
    %v931 = vpack.c.b16 %v871, %v869
    %v932 = vpack.c.b16 %v872, %v870
    %v933 = vpack.c.b16 %v875, %v873
    %v934 = vpack.c.b16 %v876, %v874
    %v935 = vpack.c.b16 %v879, %v877
    %v936 = vpack.c.b16 %v880, %v878
    %v937 = vpack.c.b16 %v883, %v881
    %v938 = vpack.c.b16 %v884, %v882
    %v939 = vpack.c.b16 %v887, %v885
    %v940 = vpack.c.b16 %v888, %v886
    %v941 = vpack.c.b16 %v891, %v889
    %v942 = vpack.c.b16 %v892, %v890
    %v943 = vpack.c.b16 %v895, %v893
    %v944 = vpack.c.b16 %v896, %v894
    %v945 = vpack.c.b16 %v899, %v897
    %v946 = vpack.c.b16 %v900, %v898
    %v947 = vpack.c.b16 %v903, %v901
    %v948 = vpack.c.b16 %v904, %v902
    %v949 = vpack.c.b16 %v907, %v905
    %v950 = vpack.c.b16 %v908, %v906
    %v951 = vpack.c.b16 %v911, %v909
    %v952 = vpack.c.b16 %v912, %v910
    %v953 = vpack.c.b16 %v915, %v913
    %v954 = vpack.c.b16 %v916, %v914
    %v955 = vpack.c.b16 %v919, %v917
    %v956 = vpack.c.b16 %v920, %v918
    %v957 = vpack.c.b16 %v923, %v921
    %v958 = vpack.c.b16 %v924, %v922
    %v959 = vpack.c.b16 %v927, %v925
    %v960 = vpack.c.b16 %v928, %v926
    %993 = vmatpush.bf16.msra.mxu0 %v943
    %994 = vmatpush.bf16.msra.mxu0 %v941
    %995 = vmatpush.bf16.msra.mxu0 %v939
    %996 = vmatpush.bf16.msra.mxu0 %v937
    %997 = vmatpush.bf16.msra.mxu0 %v935
    %998 = vmatpush.bf16.msra.mxu0 %v933
    %999 = vmatpush.bf16.msra.mxu0 %v931
    %1000 = vmatpush.bf16.msra.mxu0 %v929
    %1001 = vmatmul.bf16.gmra.mxu0 %v793
    %v1002 = vpop.f32.mrf.mxu0
    %v1003 = vadd.f32 %v829, %v1002
    %v1004 = vpop.f32.mrf.mxu0
    %1005 = vdwg.mxu0
    %1006 = vmatpush.bf16.msra.mxu0 %v959
    %1007 = vmatpush.bf16.msra.mxu0 %v957
    %1008 = vmatpush.bf16.msra.mxu0 %v955
    %1009 = vmatpush.bf16.msra.mxu0 %v953
    %1010 = vmatpush.bf16.msra.mxu0 %v951
    %1011 = vmatpush.bf16.msra.mxu0 %v949
    %1012 = vmatpush.bf16.msra.mxu0 %v947
    %1013 = vmatpush.bf16.msra.mxu0 %v945
    %1014 = vmatmul.bf16.gmra.mxu0 %v794
    %v1015 = vpop.f32.mrf.mxu0
    %v1016 = vadd.f32 %v1003, %v1015
    %v1017 = vpop.f32.mrf.mxu0
    %1018 = vdwg.mxu0
    %1019 = vmatpush.bf16.msra.mxu0 %v944
    %1020 = vmatpush.bf16.msra.mxu0 %v942
    %1021 = vmatpush.bf16.msra.mxu0 %v940
    %1022 = vmatpush.bf16.msra.mxu0 %v938
    %1023 = vmatpush.bf16.msra.mxu0 %v936
    %1024 = vmatpush.bf16.msra.mxu0 %v934
    %1025 = vmatpush.bf16.msra.mxu0 %v932
    %1026 = vmatpush.bf16.msra.mxu0 %v930
    %1027 = vmatmul.bf16.gmra.mxu0 %v793
    %v1028 = vpop.f32.mrf.mxu0
    %v1029 = vadd.f32 %v830, %v1028
    %v1030 = vpop.f32.mrf.mxu0
    %1031 = vdwg.mxu0
    %1032 = vmatpush.bf16.msra.mxu0 %v960
    %1033 = vmatpush.bf16.msra.mxu0 %v958
    %1034 = vmatpush.bf16.msra.mxu0 %v956
    %1035 = vmatpush.bf16.msra.mxu0 %v954
    %1036 = vmatpush.bf16.msra.mxu0 %v952
    %1037 = vmatpush.bf16.msra.mxu0 %v950
    %1038 = vmatpush.bf16.msra.mxu0 %v948
    %1039 = vmatpush.bf16.msra.mxu0 %v946
    %1040 = vmatmul.bf16.gmra.mxu0 %v794
    %v1041 = vpop.f32.mrf.mxu0
    %v1042 = vadd.f32 %v1029, %v1041
    %v1043 = vpop.f32.mrf.mxu0
    %1044 = vdwg.mxu0
    %v1045 = vpack.c.bf16 %v1042, %v1016
    %v1046 = vunpack.c.l.bf16 %v1045
    %v1047 = vunpack.c.h.bf16 %v1045
    %v1048 = vmax.f32 %v1046, 0.0
    %v1049 = vmax.f32 %v1047, 0.0
    %v1050 = vpack.c.bf16 %v1048, %v1048
    %v1051 = vpack.c.bf16 %v1049, %v1049
    %v1052 = vld [vmem:[#allocation13] sm:$0xf]
    %v1053 = vld [vmem:[#allocation13 + $0x4] sm:$0xf]
    %v1054 = vld [vmem:[#allocation13 + $0x8] sm:$0xf]
    %v1055 = vld [vmem:[#allocation13 + $0xc] sm:$0xf]
    %v1056 = vld [vmem:[#allocation13 + $0x10] sm:$0xf]
    %v1057 = vld [vmem:[#allocation13 + $0x14] sm:$0xf]
    %v1058 = vld [vmem:[#allocation13 + $0x18] sm:$0xf]
    %v1059 = vld [vmem:[#allocation13 + $0x1c] sm:$0xf]
    %v1060 = vld [vmem:[#allocation13 + $0x20] sm:$0xf]
    %v1061 = vld [vmem:[#allocation13 + $0x24] sm:$0xf]
    %v1062 = vld [vmem:[#allocation13 + $0x28] sm:$0xf]
    %v1063 = vld [vmem:[#allocation13 + $0x2c] sm:$0xf]
    %v1064 = vld [vmem:[#allocation13 + $0x30] sm:$0xf]
    %v1065 = vld [vmem:[#allocation13 + $0x34] sm:$0xf]
    %v1066 = vld [vmem:[#allocation13 + $0x38] sm:$0xf]
    %v1067 = vld [vmem:[#allocation13 + $0x3c] sm:$0xf]
    %v1068 = vld [vmem:[#allocation13 + $0x40] sm:$0xf]
    %v1069 = vld [vmem:[#allocation13 + $0x44] sm:$0xf]
    %v1070 = vld [vmem:[#allocation13 + $0x48] sm:$0xf]
    %v1071 = vld [vmem:[#allocation13 + $0x4c] sm:$0xf]
    %v1072 = vld [vmem:[#allocation13 + $0x50] sm:$0xf]
    %v1073 = vld [vmem:[#allocation13 + $0x54] sm:$0xf]
    %v1074 = vld [vmem:[#allocation13 + $0x58] sm:$0xf]
    %v1075 = vld [vmem:[#allocation13 + $0x5c] sm:$0xf]
    %v1076 = vld [vmem:[#allocation13 + $0x60] sm:$0xf]
    %v1077 = vld [vmem:[#allocation13 + $0x64] sm:$0xf]
    %v1078 = vld [vmem:[#allocation13 + $0x68] sm:$0xf]
    %v1079 = vld [vmem:[#allocation13 + $0x6c] sm:$0xf]
    %v1080 = vld [vmem:[#allocation13 + $0x70] sm:$0xf]
    %v1081 = vld [vmem:[#allocation13 + $0x74] sm:$0xf]
    %v1082 = vld [vmem:[#allocation13 + $0x78] sm:$0xf]
    %v1083 = vld [vmem:[#allocation13 + $0x7c] sm:$0xf]
    %v1084 = vld [vmem:[%s10] sm:$0x1]
    %v1086 = vperm.slane %v1084, 0
    %v1120 = vunpack.c.l.b16 %v1052
    %v1121 = vunpack.c.l.b16 %v1053
    %v1122 = vunpack.c.l.b16 %v1054
    %v1123 = vunpack.c.l.b16 %v1055
    %v1124 = vunpack.c.l.b16 %v1056
    %v1125 = vunpack.c.l.b16 %v1057
    %v1126 = vunpack.c.l.b16 %v1058
    %v1127 = vunpack.c.l.b16 %v1059
    %v1128 = vunpack.c.l.b16 %v1060
    %v1129 = vunpack.c.l.b16 %v1061
    %v1130 = vunpack.c.l.b16 %v1062
    %v1131 = vunpack.c.l.b16 %v1063
    %v1132 = vunpack.c.l.b16 %v1064
    %v1133 = vunpack.c.l.b16 %v1065
    %v1134 = vunpack.c.l.b16 %v1066
    %v1135 = vunpack.c.l.b16 %v1067
    %v1136 = vunpack.c.l.b16 %v1068
    %v1137 = vunpack.c.l.b16 %v1069
    %v1138 = vunpack.c.l.b16 %v1070
    %v1139 = vunpack.c.l.b16 %v1071
    %v1140 = vunpack.c.l.b16 %v1072
    %v1141 = vunpack.c.l.b16 %v1073
    %v1142 = vunpack.c.l.b16 %v1074
    %v1143 = vunpack.c.l.b16 %v1075
    %v1144 = vunpack.c.l.b16 %v1076
    %v1145 = vunpack.c.l.b16 %v1077
    %v1146 = vunpack.c.l.b16 %v1078
    %v1147 = vunpack.c.l.b16 %v1079
    %v1148 = vunpack.c.l.b16 %v1080
    %v1149 = vunpack.c.l.b16 %v1081
    %v1150 = vunpack.c.l.b16 %v1082
    %v1151 = vunpack.c.l.b16 %v1083
    %v1152 = vpack.c.b16 %v1121, %v1120
    %v1153 = vpack.c.b16 %v1123, %v1122
    %v1154 = vpack.c.b16 %v1125, %v1124
    %v1155 = vpack.c.b16 %v1127, %v1126
    %v1156 = vpack.c.b16 %v1129, %v1128
    %v1157 = vpack.c.b16 %v1131, %v1130
    %v1158 = vpack.c.b16 %v1133, %v1132
    %v1159 = vpack.c.b16 %v1135, %v1134
    %v1160 = vpack.c.b16 %v1137, %v1136
    %v1161 = vpack.c.b16 %v1139, %v1138
    %v1162 = vpack.c.b16 %v1141, %v1140
    %v1163 = vpack.c.b16 %v1143, %v1142
    %v1164 = vpack.c.b16 %v1145, %v1144
    %v1165 = vpack.c.b16 %v1147, %v1146
    %v1166 = vpack.c.b16 %v1149, %v1148
    %v1167 = vpack.c.b16 %v1151, %v1150
    %1184 = vmatpush.bf16.msra.mxu0 %v1159
    %1185 = vmatpush.bf16.msra.mxu0 %v1158
    %1186 = vmatpush.bf16.msra.mxu0 %v1157
    %1187 = vmatpush.bf16.msra.mxu0 %v1156
    %1188 = vmatpush.bf16.msra.mxu0 %v1155
    %1189 = vmatpush.bf16.msra.mxu0 %v1154
    %1190 = vmatpush.bf16.msra.mxu0 %v1153
    %1191 = vmatpush.bf16.msra.mxu0 %v1152
    %1192 = vmatmul.bf16.gmra.mxu0 %v1050
    %v1193 = vpop.f32.mrf.mxu0
    %v1194 = vadd.f32 %v1086, %v1193
    %v1195 = vpop.f32.mrf.mxu0
    %1196 = vdwg.mxu0
    %1197 = vmatpush.bf16.msra.mxu0 %v1167
    %1198 = vmatpush.bf16.msra.mxu0 %v1166
    %1199 = vmatpush.bf16.msra.mxu0 %v1165
    %1200 = vmatpush.bf16.msra.mxu0 %v1164
    %1201 = vmatpush.bf16.msra.mxu0 %v1163
    %1202 = vmatpush.bf16.msra.mxu0 %v1162
    %1203 = vmatpush.bf16.msra.mxu0 %v1161
    %1204 = vmatpush.bf16.msra.mxu0 %v1160
    %1205 = vmatmul.bf16.gmra.mxu0 %v1051
    %v1206 = vpop.f32.mrf.mxu0
    %v1207 = vadd.f32 %v1194, %v1206
    %v1208 = vpop.f32.mrf.mxu0
    %1209 = vdwg.mxu0
    %1210 = vst [vmem:[#allocation14] sm:$0xff] %v1207
    // Predicated region
    $region74: #{tpu_custom_call.1} parent=1 // pred_check
      _
    $region75: #{tpu_custom_call.1} parent=1 // pred_check_branch
      %1212 = sbr.rel (0) target = $region77
    $region76: #{tpu_custom_call.1} parent=1 // pred_region
      %1214 = vsyncadd [#allocation4], 0
      %s1216 = sshll.u32 [#allocation14], 4
      %s1217 = int_to_ptr.vmem [resolvable:$true] %s1216
      %s1218 = sshll.u32 %s11, 4
      %s1219 = int_to_ptr.hbm [resolvable:$true] %s1218
      %1221 = dma.vmem_to_hbm [thread:$0]  %s1217, 128, %s1219, [#allocation4]
    $region77: #{tpu_custom_call.1} parent=1 // pred_fallthru
      _
    // Predicated region
    $region78: #{tpu_custom_call.1} parent=1 // pred_check
      _
    $region79: #{tpu_custom_call.1} parent=1 // pred_check_branch
      %1223 = sbr.rel (0) target = $region81
    $region80: #{tpu_custom_call.1} parent=1 // pred_region
      %1225 = dma.done [#allocation4], 128
    $region81: #{tpu_custom_call.1} parent=1 // pred_fallthru
      _
    %1226 = vsyncpa [#allocation3], 1
    %1227 = vsyncpa [#allocation6], 1
    %1228 = vsyncpa [#allocation9], 1
    %1229 = vsyncpa [#allocation12], 1
    %1230 = vsyncpa [#allocation4], 1

</llo_original>
